<compile_context>
chip_gen: v5e
topology: v5e:2x2
jax: 0.10.0
libtpu: 0.0.40
codegen_flags: <defaults>
</compile_context>

<pallas_src>
import functools

import numpy as np

import jax
import jax.numpy as jnp
from jax import lax
from jax.experimental import pallas as pl
from jax.experimental.pallas import tpu as pltpu

LANES = 128        # TPU vreg lane width
MAX_TM = 1024      # max rows per grid step (1024*128*4 B = 512 KiB per buffer)
CHUNK = 32         # rows per register-resident in-kernel chunk (4 vregs f32)


def _round_up(x, m):
    return ((x + m - 1) // m) * m


def _actnet_kernel(p_ref, q_ref, r_ref, b2_ref, x_ref, o_ref, *,
                   num_units, num_pos, chunk_rows, fold):
    """One (TM, 128) tile of the elementwise 1 -> U -> 1 MLP.

    fold=True : p = w1*w2, q = b1*w2, units pre-sorted so the first `num_pos`
                have w2 >= 0 (accumulate max(t, 0)) and the rest have w2 < 0
                (accumulate min(t, 0)); r_ref is unused.
    fold=False: p = w1, q = b1, r = w2 (un-fused fallback for traced weights).
    """
    # Hoist all SMEM scalar reads and the b2 splat out of the chunk loop
    # (JAX does not CSE broadcasts / re-issued scalar loads).
    p = [p_ref[u] for u in range(num_units)]
    q = [q_ref[u] for u in range(num_units)]
    w2s = None if fold else [r_ref[u] for u in range(num_units)]
    bias = jnp.full((chunk_rows, LANES), b2_ref[0], jnp.float32)

    tile_rows = x_ref.shape[0]
    num_chunks = tile_rows // chunk_rows

    def chunk_body(ci, carry):
        row0 = pl.multiple_of(ci * chunk_rows, chunk_rows)
        x = x_ref[pl.ds(row0, chunk_rows), :]
        acc = bias                                       # b2 folded into init
        if fold:
            for u in range(num_pos):                     # units with w2 >= 0
                acc = acc + jnp.maximum(x * p[u] + q[u], 0.0)
            for u in range(num_pos, num_units):          # units with w2 < 0
                acc = acc + jnp.minimum(x * p[u] + q[u], 0.0)
        else:
            for u in range(num_units):
                acc = acc + jnp.maximum(x * p[u] + q[u], 0.0) * w2s[u]
        o_ref[pl.ds(row0, chunk_rows), :] = acc
        return carry

    unroll = 2 if (num_chunks > 1 and num_chunks % 2 == 0) else 1
    lax.fori_loop(0, num_chunks, chunk_body, 0, unroll=unroll)


def activation_network_forward(x, w1, b1, w2, b2):
    """Forward pass of ActivationNetwork (1 -> U -> 1 MLP applied elementwise).

    x  : any shape (promoted to f32)
    w1 : (U,)  first-layer weights   (torch layers[0].w[0, 0, 0, :])
    b1 : (U,)  first-layer bias      (torch layers[0].b[0, 0, :])
    w2 : (U,)  last-layer weights    (torch layers[1].w[0, 0, :, 0])
    b2 : (1,)  last-layer bias       (torch layers[1].b[0, 0, :])
    returns: f32 array with the same shape as x
    """
    orig_shape = x.shape
    num_units = int(w1.shape[0])

    w1f = jnp.asarray(w1, jnp.float32).reshape(num_units)
    b1f = jnp.asarray(b1, jnp.float32).reshape(num_units)
    w2f = jnp.asarray(w2, jnp.float32).reshape(num_units)
    b2f = jnp.asarray(b2, jnp.float32).reshape(1)

    xf = jnp.asarray(x, jnp.float32).reshape(-1)
    n = xf.shape[0]
    if n == 0:
        return jnp.zeros(orig_shape, jnp.float32)

    # Fold w2 into the layer-1 affine with a static sign split (one-time host
    # read of the tiny weight vectors).  Falls back to un-fused math if the
    # weights are traced (e.g. wrapper itself under jit w.r.t. the weights).
    try:
        w1_np = np.asarray(jax.device_get(w1)).astype(np.float32).reshape(-1)
        b1_np = np.asarray(jax.device_get(b1)).astype(np.float32).reshape(-1)
        w2_np = np.asarray(jax.device_get(w2)).astype(np.float32).reshape(-1)
        order = np.argsort(w2_np < 0, kind="stable")        # w2 >= 0 first
        num_pos = int(np.sum(w2_np >= 0))
        p = jnp.asarray((w1_np * w2_np)[order])
        q = jnp.asarray((b1_np * w2_np)[order])
        r = w2f                                              # unused when folded
        fold = True
    except Exception:                                        # traced weights
        p, q, r = w1f, b1f, w2f
        num_pos, fold = 0, False

    # Lane-dense layout (rows, 128); pad/slice only when n % 128 != 0.
    rows = pl.cdiv(n, LANES)
    if n % LANES:
        xf = jnp.pad(xf, (0, rows * LANES - n))
    x2 = xf.reshape(rows, LANES)

    # Row tile: multiple of the in-kernel chunk, >= 2 grid steps when rows
    # allow it (so both v7x TensorCores get work), capped for VMEM buffers.
    if rows >= 2 * CHUNK:
        tm = min(MAX_TM, max(CHUNK, _round_up(pl.cdiv(rows, 2), CHUNK)))
        chunk = CHUNK
    else:
        tm = _round_up(rows, 8)
        chunk = CHUNK if tm % CHUNK == 0 else (16 if tm % 16 == 0 else 8)
    grid = (pl.cdiv(rows, tm),)

    grid_spec = pltpu.PrefetchScalarGridSpec(
        num_scalar_prefetch=4,                 # p, q, r, b2 -> SMEM, resident
        grid=grid,
        in_specs=[pl.BlockSpec((tm, LANES), lambda i, *_: (i, 0))],
        out_specs=pl.BlockSpec((tm, LANES), lambda i, *_: (i, 0)),
    )

    out2 = pl.pallas_call(
        functools.partial(_actnet_kernel, num_units=num_units, num_pos=num_pos,
                          chunk_rows=chunk, fold=fold),
        out_shape=jax.ShapeDtypeStruct((rows, LANES), jnp.float32),
        grid_spec=grid_spec,
        compiler_params=pltpu.CompilerParams(
            dimension_semantics=("parallel",)),
    )(p, q, r, b2f, x2)

    if n % LANES:
        return out2.reshape(-1)[:n].reshape(orig_shape)
    return out2.reshape(orig_shape)


# TODO(synk): the PyTorch module also accepts num_units as a list (stacked
# ElementwiseLinearLayers with per-element U_i x U_{i+1} contractions); only
# the default single-hidden-layer configuration (1 -> 32 -> 1) is implemented.


def _init_params(key, num_units=32):
    """Deterministic init roughly mimicking the torch layer defaults."""
    k1, k2, k3, k4 = jax.random.split(key, 4)
    w1 = jax.random.uniform(k1, (num_units,), jnp.float32, -1.0, 1.0)
    b1 = jax.random.uniform(k2, (num_units,), jnp.float32, -1.0, 1.0)
    bound2 = 1.0 / jnp.sqrt(float(num_units))
    w2 = jax.random.uniform(k3, (num_units,), jnp.float32, -bound2, bound2)
    b2 = jax.random.uniform(k4, (1,), jnp.float32, -bound2, bound2)
    return w1, b1, w2, b2


def _reference_forward(x, w1, b1, w2, b2):
    """Pure-JAX reference of the PyTorch forward."""
    xe = x.astype(jnp.float32)[..., None]                  # (..., 1)
    h = jnp.maximum(xe * w1 + b1, 0.0)                     # (..., U)
    return jnp.sum(h * w2, axis=-1) + b2[0]                # (...,)


if __name__ == "__main__":
    key = jax.random.PRNGKey(0)
    k_params, k_x = jax.random.split(key)
    w1, b1, w2, b2 = _init_params(k_params, num_units=32)

    # Small example input; ActivationNetwork applies elementwise to any shape.
    x = jax.random.normal(k_x, (2, 4, 16, 16), jnp.float32)

    out = activation_network_forward(x, w1, b1, w2, b2)
    out = jax.block_until_ready(out)

    ref = _reference_forward(x, w1, b1, w2, b2)
    assert out.shape == x.shape
    assert jnp.allclose(out, ref, atol=1e-4, rtol=1e-4)

    print("KERNEL_OK")
</pallas_src>

<mosaic_0001>
module attributes {stable_mosaic.version = 11 : i64} {
  func.func @_actnet_kernel(%arg0: i32, %arg1: memref<32xf32, #tpu.memory_space<smem>>, %arg2: memref<32xf32, #tpu.memory_space<smem>>, %arg3: memref<32xf32, #tpu.memory_space<smem>>, %arg4: memref<1xf32, #tpu.memory_space<smem>>, %arg5: memref<16x128xf32, #tpu.memory_space<vmem>>, %arg6: memref<16x128xf32, #tpu.memory_space<vmem>>) attributes {dimension_semantics = [#tpu.dimension_semantics<parallel>], iteration_bounds = array<i64: 1>, scalar_prefetch = 4 : i64, scratch_operands = 0 : i64, tpu.core_type = #tpu.core_type<tc>, window_params = [{transform_indices = @transform_0, window_bounds = array<i64: 16, 128>}, {transform_indices = @transform_1, window_bounds = array<i64: 16, 128>}]} {
    %c0 = arith.constant 0 : index
    %0 = memref.load %arg1[%c0] : memref<32xf32, #tpu.memory_space<smem>>
    %c1 = arith.constant 1 : index
    %1 = memref.load %arg1[%c1] : memref<32xf32, #tpu.memory_space<smem>>
    %c2 = arith.constant 2 : index
    %2 = memref.load %arg1[%c2] : memref<32xf32, #tpu.memory_space<smem>>
    %c3 = arith.constant 3 : index
    %3 = memref.load %arg1[%c3] : memref<32xf32, #tpu.memory_space<smem>>
    %c4 = arith.constant 4 : index
    %4 = memref.load %arg1[%c4] : memref<32xf32, #tpu.memory_space<smem>>
    %c5 = arith.constant 5 : index
    %5 = memref.load %arg1[%c5] : memref<32xf32, #tpu.memory_space<smem>>
    %c6 = arith.constant 6 : index
    %6 = memref.load %arg1[%c6] : memref<32xf32, #tpu.memory_space<smem>>
    %c7 = arith.constant 7 : index
    %7 = memref.load %arg1[%c7] : memref<32xf32, #tpu.memory_space<smem>>
    %c8 = arith.constant 8 : index
    %8 = memref.load %arg1[%c8] : memref<32xf32, #tpu.memory_space<smem>>
    %c9 = arith.constant 9 : index
    %9 = memref.load %arg1[%c9] : memref<32xf32, #tpu.memory_space<smem>>
    %c10 = arith.constant 10 : index
    %10 = memref.load %arg1[%c10] : memref<32xf32, #tpu.memory_space<smem>>
    %c11 = arith.constant 11 : index
    %11 = memref.load %arg1[%c11] : memref<32xf32, #tpu.memory_space<smem>>
    %c12 = arith.constant 12 : index
    %12 = memref.load %arg1[%c12] : memref<32xf32, #tpu.memory_space<smem>>
    %c13 = arith.constant 13 : index
    %13 = memref.load %arg1[%c13] : memref<32xf32, #tpu.memory_space<smem>>
    %c14 = arith.constant 14 : index
    %14 = memref.load %arg1[%c14] : memref<32xf32, #tpu.memory_space<smem>>
    %c15 = arith.constant 15 : index
    %15 = memref.load %arg1[%c15] : memref<32xf32, #tpu.memory_space<smem>>
    %c16 = arith.constant 16 : index
    %16 = memref.load %arg1[%c16] : memref<32xf32, #tpu.memory_space<smem>>
    %c17 = arith.constant 17 : index
    %17 = memref.load %arg1[%c17] : memref<32xf32, #tpu.memory_space<smem>>
    %c18 = arith.constant 18 : index
    %18 = memref.load %arg1[%c18] : memref<32xf32, #tpu.memory_space<smem>>
    %c19 = arith.constant 19 : index
    %19 = memref.load %arg1[%c19] : memref<32xf32, #tpu.memory_space<smem>>
    %c20 = arith.constant 20 : index
    %20 = memref.load %arg1[%c20] : memref<32xf32, #tpu.memory_space<smem>>
    %c21 = arith.constant 21 : index
    %21 = memref.load %arg1[%c21] : memref<32xf32, #tpu.memory_space<smem>>
    %c22 = arith.constant 22 : index
    %22 = memref.load %arg1[%c22] : memref<32xf32, #tpu.memory_space<smem>>
    %c23 = arith.constant 23 : index
    %23 = memref.load %arg1[%c23] : memref<32xf32, #tpu.memory_space<smem>>
    %c24 = arith.constant 24 : index
    %24 = memref.load %arg1[%c24] : memref<32xf32, #tpu.memory_space<smem>>
    %c25 = arith.constant 25 : index
    %25 = memref.load %arg1[%c25] : memref<32xf32, #tpu.memory_space<smem>>
    %c26 = arith.constant 26 : index
    %26 = memref.load %arg1[%c26] : memref<32xf32, #tpu.memory_space<smem>>
    %c27 = arith.constant 27 : index
    %27 = memref.load %arg1[%c27] : memref<32xf32, #tpu.memory_space<smem>>
    %c28 = arith.constant 28 : index
    %28 = memref.load %arg1[%c28] : memref<32xf32, #tpu.memory_space<smem>>
    %c29 = arith.constant 29 : index
    %29 = memref.load %arg1[%c29] : memref<32xf32, #tpu.memory_space<smem>>
    %c30 = arith.constant 30 : index
    %30 = memref.load %arg1[%c30] : memref<32xf32, #tpu.memory_space<smem>>
    %c31 = arith.constant 31 : index
    %31 = memref.load %arg1[%c31] : memref<32xf32, #tpu.memory_space<smem>>
    %c0_0 = arith.constant 0 : index
    %32 = memref.load %arg2[%c0_0] : memref<32xf32, #tpu.memory_space<smem>>
    %c1_1 = arith.constant 1 : index
    %33 = memref.load %arg2[%c1_1] : memref<32xf32, #tpu.memory_space<smem>>
    %c2_2 = arith.constant 2 : index
    %34 = memref.load %arg2[%c2_2] : memref<32xf32, #tpu.memory_space<smem>>
    %c3_3 = arith.constant 3 : index
    %35 = memref.load %arg2[%c3_3] : memref<32xf32, #tpu.memory_space<smem>>
    %c4_4 = arith.constant 4 : index
    %36 = memref.load %arg2[%c4_4] : memref<32xf32, #tpu.memory_space<smem>>
    %c5_5 = arith.constant 5 : index
    %37 = memref.load %arg2[%c5_5] : memref<32xf32, #tpu.memory_space<smem>>
    %c6_6 = arith.constant 6 : index
    %38 = memref.load %arg2[%c6_6] : memref<32xf32, #tpu.memory_space<smem>>
    %c7_7 = arith.constant 7 : index
    %39 = memref.load %arg2[%c7_7] : memref<32xf32, #tpu.memory_space<smem>>
    %c8_8 = arith.constant 8 : index
    %40 = memref.load %arg2[%c8_8] : memref<32xf32, #tpu.memory_space<smem>>
    %c9_9 = arith.constant 9 : index
    %41 = memref.load %arg2[%c9_9] : memref<32xf32, #tpu.memory_space<smem>>
    %c10_10 = arith.constant 10 : index
    %42 = memref.load %arg2[%c10_10] : memref<32xf32, #tpu.memory_space<smem>>
    %c11_11 = arith.constant 11 : index
    %43 = memref.load %arg2[%c11_11] : memref<32xf32, #tpu.memory_space<smem>>
    %c12_12 = arith.constant 12 : index
    %44 = memref.load %arg2[%c12_12] : memref<32xf32, #tpu.memory_space<smem>>
    %c13_13 = arith.constant 13 : index
    %45 = memref.load %arg2[%c13_13] : memref<32xf32, #tpu.memory_space<smem>>
    %c14_14 = arith.constant 14 : index
    %46 = memref.load %arg2[%c14_14] : memref<32xf32, #tpu.memory_space<smem>>
    %c15_15 = arith.constant 15 : index
    %47 = memref.load %arg2[%c15_15] : memref<32xf32, #tpu.memory_space<smem>>
    %c16_16 = arith.constant 16 : index
    %48 = memref.load %arg2[%c16_16] : memref<32xf32, #tpu.memory_space<smem>>
    %c17_17 = arith.constant 17 : index
    %49 = memref.load %arg2[%c17_17] : memref<32xf32, #tpu.memory_space<smem>>
    %c18_18 = arith.constant 18 : index
    %50 = memref.load %arg2[%c18_18] : memref<32xf32, #tpu.memory_space<smem>>
    %c19_19 = arith.constant 19 : index
    %51 = memref.load %arg2[%c19_19] : memref<32xf32, #tpu.memory_space<smem>>
    %c20_20 = arith.constant 20 : index
    %52 = memref.load %arg2[%c20_20] : memref<32xf32, #tpu.memory_space<smem>>
    %c21_21 = arith.constant 21 : index
    %53 = memref.load %arg2[%c21_21] : memref<32xf32, #tpu.memory_space<smem>>
    %c22_22 = arith.constant 22 : index
    %54 = memref.load %arg2[%c22_22] : memref<32xf32, #tpu.memory_space<smem>>
    %c23_23 = arith.constant 23 : index
    %55 = memref.load %arg2[%c23_23] : memref<32xf32, #tpu.memory_space<smem>>
    %c24_24 = arith.constant 24 : index
    %56 = memref.load %arg2[%c24_24] : memref<32xf32, #tpu.memory_space<smem>>
    %c25_25 = arith.constant 25 : index
    %57 = memref.load %arg2[%c25_25] : memref<32xf32, #tpu.memory_space<smem>>
    %c26_26 = arith.constant 26 : index
    %58 = memref.load %arg2[%c26_26] : memref<32xf32, #tpu.memory_space<smem>>
    %c27_27 = arith.constant 27 : index
    %59 = memref.load %arg2[%c27_27] : memref<32xf32, #tpu.memory_space<smem>>
    %c28_28 = arith.constant 28 : index
    %60 = memref.load %arg2[%c28_28] : memref<32xf32, #tpu.memory_space<smem>>
    %c29_29 = arith.constant 29 : index
    %61 = memref.load %arg2[%c29_29] : memref<32xf32, #tpu.memory_space<smem>>
    %c30_30 = arith.constant 30 : index
    %62 = memref.load %arg2[%c30_30] : memref<32xf32, #tpu.memory_space<smem>>
    %c31_31 = arith.constant 31 : index
    %63 = memref.load %arg2[%c31_31] : memref<32xf32, #tpu.memory_space<smem>>
    %c0_32 = arith.constant 0 : index
    %64 = memref.load %arg4[%c0_32] : memref<1xf32, #tpu.memory_space<smem>>
    %65 = vector.broadcast %64 : f32 to vector<16x128xf32>
    %c0_i32 = arith.constant 0 : i32
    %c16_i32 = arith.constant 16 : i32
    %66 = arith.muli %c0_i32, %c16_i32 : i32
    %67 = tpu.assume_multiple %66, 16 : i32
    %68 = arith.index_cast %67 : i32 to index
    %c0_33 = arith.constant 0 : index
    %69 = vector.load %arg5[%68, %c0_33] : memref<16x128xf32, #tpu.memory_space<vmem>>, vector<16x128xf32>
    %70 = vector.broadcast %0 : f32 to vector<16x128xf32>
    %71 = arith.mulf %69, %70 : vector<16x128xf32>
    %72 = vector.broadcast %32 : f32 to vector<16x128xf32>
    %73 = arith.addf %71, %72 : vector<16x128xf32>
    %cst = arith.constant 0.000000e+00 : f32
    %74 = vector.broadcast %cst : f32 to vector<16x128xf32>
    %75 = arith.maximumf %73, %74 : vector<16x128xf32>
    %76 = arith.addf %65, %75 : vector<16x128xf32>
    %77 = vector.broadcast %1 : f32 to vector<16x128xf32>
    %78 = arith.mulf %69, %77 : vector<16x128xf32>
    %79 = vector.broadcast %33 : f32 to vector<16x128xf32>
    %80 = arith.addf %78, %79 : vector<16x128xf32>
    %cst_34 = arith.constant 0.000000e+00 : f32
    %81 = vector.broadcast %cst_34 : f32 to vector<16x128xf32>
    %82 = arith.maximumf %80, %81 : vector<16x128xf32>
    %83 = arith.addf %76, %82 : vector<16x128xf32>
    %84 = vector.broadcast %2 : f32 to vector<16x128xf32>
    %85 = arith.mulf %69, %84 : vector<16x128xf32>
    %86 = vector.broadcast %34 : f32 to vector<16x128xf32>
    %87 = arith.addf %85, %86 : vector<16x128xf32>
    %cst_35 = arith.constant 0.000000e+00 : f32
    %88 = vector.broadcast %cst_35 : f32 to vector<16x128xf32>
    %89 = arith.maximumf %87, %88 : vector<16x128xf32>
    %90 = arith.addf %83, %89 : vector<16x128xf32>
    %91 = vector.broadcast %3 : f32 to vector<16x128xf32>
    %92 = arith.mulf %69, %91 : vector<16x128xf32>
    %93 = vector.broadcast %35 : f32 to vector<16x128xf32>
    %94 = arith.addf %92, %93 : vector<16x128xf32>
    %cst_36 = arith.constant 0.000000e+00 : f32
    %95 = vector.broadcast %cst_36 : f32 to vector<16x128xf32>
    %96 = arith.maximumf %94, %95 : vector<16x128xf32>
    %97 = arith.addf %90, %96 : vector<16x128xf32>
    %98 = vector.broadcast %4 : f32 to vector<16x128xf32>
    %99 = arith.mulf %69, %98 : vector<16x128xf32>
    %100 = vector.broadcast %36 : f32 to vector<16x128xf32>
    %101 = arith.addf %99, %100 : vector<16x128xf32>
    %cst_37 = arith.constant 0.000000e+00 : f32
    %102 = vector.broadcast %cst_37 : f32 to vector<16x128xf32>
    %103 = arith.maximumf %101, %102 : vector<16x128xf32>
    %104 = arith.addf %97, %103 : vector<16x128xf32>
    %105 = vector.broadcast %5 : f32 to vector<16x128xf32>
    %106 = arith.mulf %69, %105 : vector<16x128xf32>
    %107 = vector.broadcast %37 : f32 to vector<16x128xf32>
    %108 = arith.addf %106, %107 : vector<16x128xf32>
    %cst_38 = arith.constant 0.000000e+00 : f32
    %109 = vector.broadcast %cst_38 : f32 to vector<16x128xf32>
    %110 = arith.maximumf %108, %109 : vector<16x128xf32>
    %111 = arith.addf %104, %110 : vector<16x128xf32>
    %112 = vector.broadcast %6 : f32 to vector<16x128xf32>
    %113 = arith.mulf %69, %112 : vector<16x128xf32>
    %114 = vector.broadcast %38 : f32 to vector<16x128xf32>
    %115 = arith.addf %113, %114 : vector<16x128xf32>
    %cst_39 = arith.constant 0.000000e+00 : f32
    %116 = vector.broadcast %cst_39 : f32 to vector<16x128xf32>
    %117 = arith.maximumf %115, %116 : vector<16x128xf32>
    %118 = arith.addf %111, %117 : vector<16x128xf32>
    %119 = vector.broadcast %7 : f32 to vector<16x128xf32>
    %120 = arith.mulf %69, %119 : vector<16x128xf32>
    %121 = vector.broadcast %39 : f32 to vector<16x128xf32>
    %122 = arith.addf %120, %121 : vector<16x128xf32>
    %cst_40 = arith.constant 0.000000e+00 : f32
    %123 = vector.broadcast %cst_40 : f32 to vector<16x128xf32>
    %124 = arith.maximumf %122, %123 : vector<16x128xf32>
    %125 = arith.addf %118, %124 : vector<16x128xf32>
    %126 = vector.broadcast %8 : f32 to vector<16x128xf32>
    %127 = arith.mulf %69, %126 : vector<16x128xf32>
    %128 = vector.broadcast %40 : f32 to vector<16x128xf32>
    %129 = arith.addf %127, %128 : vector<16x128xf32>
    %cst_41 = arith.constant 0.000000e+00 : f32
    %130 = vector.broadcast %cst_41 : f32 to vector<16x128xf32>
    %131 = arith.maximumf %129, %130 : vector<16x128xf32>
    %132 = arith.addf %125, %131 : vector<16x128xf32>
    %133 = vector.broadcast %9 : f32 to vector<16x128xf32>
    %134 = arith.mulf %69, %133 : vector<16x128xf32>
    %135 = vector.broadcast %41 : f32 to vector<16x128xf32>
    %136 = arith.addf %134, %135 : vector<16x128xf32>
    %cst_42 = arith.constant 0.000000e+00 : f32
    %137 = vector.broadcast %cst_42 : f32 to vector<16x128xf32>
    %138 = arith.maximumf %136, %137 : vector<16x128xf32>
    %139 = arith.addf %132, %138 : vector<16x128xf32>
    %140 = vector.broadcast %10 : f32 to vector<16x128xf32>
    %141 = arith.mulf %69, %140 : vector<16x128xf32>
    %142 = vector.broadcast %42 : f32 to vector<16x128xf32>
    %143 = arith.addf %141, %142 : vector<16x128xf32>
    %cst_43 = arith.constant 0.000000e+00 : f32
    %144 = vector.broadcast %cst_43 : f32 to vector<16x128xf32>
    %145 = arith.maximumf %143, %144 : vector<16x128xf32>
    %146 = arith.addf %139, %145 : vector<16x128xf32>
    %147 = vector.broadcast %11 : f32 to vector<16x128xf32>
    %148 = arith.mulf %69, %147 : vector<16x128xf32>
    %149 = vector.broadcast %43 : f32 to vector<16x128xf32>
    %150 = arith.addf %148, %149 : vector<16x128xf32>
    %cst_44 = arith.constant 0.000000e+00 : f32
    %151 = vector.broadcast %cst_44 : f32 to vector<16x128xf32>
    %152 = arith.maximumf %150, %151 : vector<16x128xf32>
    %153 = arith.addf %146, %152 : vector<16x128xf32>
    %154 = vector.broadcast %12 : f32 to vector<16x128xf32>
    %155 = arith.mulf %69, %154 : vector<16x128xf32>
    %156 = vector.broadcast %44 : f32 to vector<16x128xf32>
    %157 = arith.addf %155, %156 : vector<16x128xf32>
    %cst_45 = arith.constant 0.000000e+00 : f32
    %158 = vector.broadcast %cst_45 : f32 to vector<16x128xf32>
    %159 = arith.maximumf %157, %158 : vector<16x128xf32>
    %160 = arith.addf %153, %159 : vector<16x128xf32>
    %161 = vector.broadcast %13 : f32 to vector<16x128xf32>
    %162 = arith.mulf %69, %161 : vector<16x128xf32>
    %163 = vector.broadcast %45 : f32 to vector<16x128xf32>
    %164 = arith.addf %162, %163 : vector<16x128xf32>
    %cst_46 = arith.constant 0.000000e+00 : f32
    %165 = vector.broadcast %cst_46 : f32 to vector<16x128xf32>
    %166 = arith.maximumf %164, %165 : vector<16x128xf32>
    %167 = arith.addf %160, %166 : vector<16x128xf32>
    %168 = vector.broadcast %14 : f32 to vector<16x128xf32>
    %169 = arith.mulf %69, %168 : vector<16x128xf32>
    %170 = vector.broadcast %46 : f32 to vector<16x128xf32>
    %171 = arith.addf %169, %170 : vector<16x128xf32>
    %cst_47 = arith.constant 0.000000e+00 : f32
    %172 = vector.broadcast %cst_47 : f32 to vector<16x128xf32>
    %173 = arith.maximumf %171, %172 : vector<16x128xf32>
    %174 = arith.addf %167, %173 : vector<16x128xf32>
    %175 = vector.broadcast %15 : f32 to vector<16x128xf32>
    %176 = arith.mulf %69, %175 : vector<16x128xf32>
    %177 = vector.broadcast %47 : f32 to vector<16x128xf32>
    %178 = arith.addf %176, %177 : vector<16x128xf32>
    %cst_48 = arith.constant 0.000000e+00 : f32
    %179 = vector.broadcast %cst_48 : f32 to vector<16x128xf32>
    %180 = arith.maximumf %178, %179 : vector<16x128xf32>
    %181 = arith.addf %174, %180 : vector<16x128xf32>
    %182 = vector.broadcast %16 : f32 to vector<16x128xf32>
    %183 = arith.mulf %69, %182 : vector<16x128xf32>
    %184 = vector.broadcast %48 : f32 to vector<16x128xf32>
    %185 = arith.addf %183, %184 : vector<16x128xf32>
    %cst_49 = arith.constant 0.000000e+00 : f32
    %186 = vector.broadcast %cst_49 : f32 to vector<16x128xf32>
    %187 = arith.maximumf %185, %186 : vector<16x128xf32>
    %188 = arith.addf %181, %187 : vector<16x128xf32>
    %189 = vector.broadcast %17 : f32 to vector<16x128xf32>
    %190 = arith.mulf %69, %189 : vector<16x128xf32>
    %191 = vector.broadcast %49 : f32 to vector<16x128xf32>
    %192 = arith.addf %190, %191 : vector<16x128xf32>
    %cst_50 = arith.constant 0.000000e+00 : f32
    %193 = vector.broadcast %cst_50 : f32 to vector<16x128xf32>
    %194 = arith.maximumf %192, %193 : vector<16x128xf32>
    %195 = arith.addf %188, %194 : vector<16x128xf32>
    %196 = vector.broadcast %18 : f32 to vector<16x128xf32>
    %197 = arith.mulf %69, %196 : vector<16x128xf32>
    %198 = vector.broadcast %50 : f32 to vector<16x128xf32>
    %199 = arith.addf %197, %198 : vector<16x128xf32>
    %cst_51 = arith.constant 0.000000e+00 : f32
    %200 = vector.broadcast %cst_51 : f32 to vector<16x128xf32>
    %201 = arith.minimumf %199, %200 : vector<16x128xf32>
    %202 = arith.addf %195, %201 : vector<16x128xf32>
    %203 = vector.broadcast %19 : f32 to vector<16x128xf32>
    %204 = arith.mulf %69, %203 : vector<16x128xf32>
    %205 = vector.broadcast %51 : f32 to vector<16x128xf32>
    %206 = arith.addf %204, %205 : vector<16x128xf32>
    %cst_52 = arith.constant 0.000000e+00 : f32
    %207 = vector.broadcast %cst_52 : f32 to vector<16x128xf32>
    %208 = arith.minimumf %206, %207 : vector<16x128xf32>
    %209 = arith.addf %202, %208 : vector<16x128xf32>
    %210 = vector.broadcast %20 : f32 to vector<16x128xf32>
    %211 = arith.mulf %69, %210 : vector<16x128xf32>
    %212 = vector.broadcast %52 : f32 to vector<16x128xf32>
    %213 = arith.addf %211, %212 : vector<16x128xf32>
    %cst_53 = arith.constant 0.000000e+00 : f32
    %214 = vector.broadcast %cst_53 : f32 to vector<16x128xf32>
    %215 = arith.minimumf %213, %214 : vector<16x128xf32>
    %216 = arith.addf %209, %215 : vector<16x128xf32>
    %217 = vector.broadcast %21 : f32 to vector<16x128xf32>
    %218 = arith.mulf %69, %217 : vector<16x128xf32>
    %219 = vector.broadcast %53 : f32 to vector<16x128xf32>
    %220 = arith.addf %218, %219 : vector<16x128xf32>
    %cst_54 = arith.constant 0.000000e+00 : f32
    %221 = vector.broadcast %cst_54 : f32 to vector<16x128xf32>
    %222 = arith.minimumf %220, %221 : vector<16x128xf32>
    %223 = arith.addf %216, %222 : vector<16x128xf32>
    %224 = vector.broadcast %22 : f32 to vector<16x128xf32>
    %225 = arith.mulf %69, %224 : vector<16x128xf32>
    %226 = vector.broadcast %54 : f32 to vector<16x128xf32>
    %227 = arith.addf %225, %226 : vector<16x128xf32>
    %cst_55 = arith.constant 0.000000e+00 : f32
    %228 = vector.broadcast %cst_55 : f32 to vector<16x128xf32>
    %229 = arith.minimumf %227, %228 : vector<16x128xf32>
    %230 = arith.addf %223, %229 : vector<16x128xf32>
    %231 = vector.broadcast %23 : f32 to vector<16x128xf32>
    %232 = arith.mulf %69, %231 : vector<16x128xf32>
    %233 = vector.broadcast %55 : f32 to vector<16x128xf32>
    %234 = arith.addf %232, %233 : vector<16x128xf32>
    %cst_56 = arith.constant 0.000000e+00 : f32
    %235 = vector.broadcast %cst_56 : f32 to vector<16x128xf32>
    %236 = arith.minimumf %234, %235 : vector<16x128xf32>
    %237 = arith.addf %230, %236 : vector<16x128xf32>
    %238 = vector.broadcast %24 : f32 to vector<16x128xf32>
    %239 = arith.mulf %69, %238 : vector<16x128xf32>
    %240 = vector.broadcast %56 : f32 to vector<16x128xf32>
    %241 = arith.addf %239, %240 : vector<16x128xf32>
    %cst_57 = arith.constant 0.000000e+00 : f32
    %242 = vector.broadcast %cst_57 : f32 to vector<16x128xf32>
    %243 = arith.minimumf %241, %242 : vector<16x128xf32>
    %244 = arith.addf %237, %243 : vector<16x128xf32>
    %245 = vector.broadcast %25 : f32 to vector<16x128xf32>
    %246 = arith.mulf %69, %245 : vector<16x128xf32>
    %247 = vector.broadcast %57 : f32 to vector<16x128xf32>
    %248 = arith.addf %246, %247 : vector<16x128xf32>
    %cst_58 = arith.constant 0.000000e+00 : f32
    %249 = vector.broadcast %cst_58 : f32 to vector<16x128xf32>
    %250 = arith.minimumf %248, %249 : vector<16x128xf32>
    %251 = arith.addf %244, %250 : vector<16x128xf32>
    %252 = vector.broadcast %26 : f32 to vector<16x128xf32>
    %253 = arith.mulf %69, %252 : vector<16x128xf32>
    %254 = vector.broadcast %58 : f32 to vector<16x128xf32>
    %255 = arith.addf %253, %254 : vector<16x128xf32>
    %cst_59 = arith.constant 0.000000e+00 : f32
    %256 = vector.broadcast %cst_59 : f32 to vector<16x128xf32>
    %257 = arith.minimumf %255, %256 : vector<16x128xf32>
    %258 = arith.addf %251, %257 : vector<16x128xf32>
    %259 = vector.broadcast %27 : f32 to vector<16x128xf32>
    %260 = arith.mulf %69, %259 : vector<16x128xf32>
    %261 = vector.broadcast %59 : f32 to vector<16x128xf32>
    %262 = arith.addf %260, %261 : vector<16x128xf32>
    %cst_60 = arith.constant 0.000000e+00 : f32
    %263 = vector.broadcast %cst_60 : f32 to vector<16x128xf32>
    %264 = arith.minimumf %262, %263 : vector<16x128xf32>
    %265 = arith.addf %258, %264 : vector<16x128xf32>
    %266 = vector.broadcast %28 : f32 to vector<16x128xf32>
    %267 = arith.mulf %69, %266 : vector<16x128xf32>
    %268 = vector.broadcast %60 : f32 to vector<16x128xf32>
    %269 = arith.addf %267, %268 : vector<16x128xf32>
    %cst_61 = arith.constant 0.000000e+00 : f32
    %270 = vector.broadcast %cst_61 : f32 to vector<16x128xf32>
    %271 = arith.minimumf %269, %270 : vector<16x128xf32>
    %272 = arith.addf %265, %271 : vector<16x128xf32>
    %273 = vector.broadcast %29 : f32 to vector<16x128xf32>
    %274 = arith.mulf %69, %273 : vector<16x128xf32>
    %275 = vector.broadcast %61 : f32 to vector<16x128xf32>
    %276 = arith.addf %274, %275 : vector<16x128xf32>
    %cst_62 = arith.constant 0.000000e+00 : f32
    %277 = vector.broadcast %cst_62 : f32 to vector<16x128xf32>
    %278 = arith.minimumf %276, %277 : vector<16x128xf32>
    %279 = arith.addf %272, %278 : vector<16x128xf32>
    %280 = vector.broadcast %30 : f32 to vector<16x128xf32>
    %281 = arith.mulf %69, %280 : vector<16x128xf32>
    %282 = vector.broadcast %62 : f32 to vector<16x128xf32>
    %283 = arith.addf %281, %282 : vector<16x128xf32>
    %cst_63 = arith.constant 0.000000e+00 : f32
    %284 = vector.broadcast %cst_63 : f32 to vector<16x128xf32>
    %285 = arith.minimumf %283, %284 : vector<16x128xf32>
    %286 = arith.addf %279, %285 : vector<16x128xf32>
    %287 = vector.broadcast %31 : f32 to vector<16x128xf32>
    %288 = arith.mulf %69, %287 : vector<16x128xf32>
    %289 = vector.broadcast %63 : f32 to vector<16x128xf32>
    %290 = arith.addf %288, %289 : vector<16x128xf32>
    %cst_64 = arith.constant 0.000000e+00 : f32
    %291 = vector.broadcast %cst_64 : f32 to vector<16x128xf32>
    %292 = arith.minimumf %290, %291 : vector<16x128xf32>
    %293 = arith.addf %286, %292 : vector<16x128xf32>
    %294 = arith.index_cast %67 : i32 to index
    %c0_65 = arith.constant 0 : index
    %295 = vector.load %arg6[%294, %c0_65] : memref<16x128xf32, #tpu.memory_space<vmem>>, vector<16x128xf32>
    tpu.vector_store %arg6[%294, %c0_65], %293 {strides = array<i32>} : memref<16x128xf32, #tpu.memory_space<vmem>>, vector<16x128xf32>,
    %c1_i32 = arith.constant 1 : i32
    return
  }
  func.func @transform_0(%arg0: i32, %arg1: memref<32xf32, #tpu.memory_space<smem>>, %arg2: memref<32xf32, #tpu.memory_space<smem>>, %arg3: memref<32xf32, #tpu.memory_space<smem>>, %arg4: memref<1xf32, #tpu.memory_space<smem>>) -> (i32, i32) {
    %c0_i32 = arith.constant 0 : i32
    %c0_i32_0 = arith.constant 0 : i32
    return %arg0, %c0_i32 : i32, i32
  }
  func.func @transform_1(%arg0: i32, %arg1: memref<32xf32, #tpu.memory_space<smem>>, %arg2: memref<32xf32, #tpu.memory_space<smem>>, %arg3: memref<32xf32, #tpu.memory_space<smem>>, %arg4: memref<1xf32, #tpu.memory_space<smem>>) -> (i32, i32) {
    %c0_i32 = arith.constant 0 : i32
    %c0_i32_0 = arith.constant 0 : i32
    return %arg0, %c0_i32 : i32, i32
  }
}

</mosaic_0001>

<llo_original>
// kernel: tpu_custom_call.1
$region0: #{tpu_custom_call.1}
  #allocation0 [shape = 'u32[]', space=smem, size = 0x4, offset = 0x4, fixed_abs, tag = 'smem constant byte address 0x4 - core index']
  #allocation1 [shape = 'u32[72,128]{1,0:T(1,128)}', space=vmem, size = 0x9000, scoped, tag = 'internal scratch']
  #allocation2 [shape = 's32[1]{0}', space=sflag, size = 0x4, scoped, tag = 'scoped memory for tpu_custom_call.1']
  #allocation3 [shape = 'u8[512]{0}', space=smem, size = 0x200, scoped, tag = 'prefetched SMEM operand 0']
  #allocation4 [shape = 'u8[512]{0}', space=smem, size = 0x200, scoped, tag = 'prefetched SMEM operand 1']
  #allocation5 [shape = 'u8[512]{0}', space=smem, size = 0x200, scoped, tag = 'prefetched SMEM operand 2']
  #allocation6 [shape = 'f32[1]{0:T(128)S(6)}', space=smem, size = 0x200, scoped, tag = 'prefetched SMEM operand 3']
  %s0 = inlined_call_operand.vmem [shape: f32[32], index: 0, kind: input, shape index: {}]
  %s1 = inlined_call_operand.vmem [shape: f32[32], index: 1, kind: input, shape index: {}]
  %s2 = inlined_call_operand.vmem [shape: f32[32], index: 2, kind: input, shape index: {}]
  %s3 = inlined_call_operand.<no memory space> [shape: f32[1], index: 3, kind: input, shape index: {}]
  %s4 = inlined_call_operand.hbm [shape: f32[16,128], index: 4, kind: input, shape index: {}]
  %s5 = inlined_call_operand.hbm [shape: f32[16,128], index: 5, kind: output, shape index: {}]
  %s6 = sld [smem:[#allocation0]]
  $region18: #{tpu_custom_call.1} parent=0
    _
  %s8 = ssub.s32 1, %s6
  %s9 = scalar_select 0, %s8, %s6
  %s11 = sshll.u32 %s0, 4
  %s12 = int_to_ptr.vmem [resolvable:$true] %s11
  %14 = dma.vmem_to_smem %s12, 16, [#allocation3], [#allocation2]
  %s16 = sshll.u32 %s1, 4
  %s17 = int_to_ptr.vmem [resolvable:$true] %s16
  %19 = dma.vmem_to_smem %s17, 16, [#allocation4], [#allocation2]
  %s21 = sshll.u32 %s2, 4
  %s22 = int_to_ptr.vmem [resolvable:$true] %s21
  %24 = dma.vmem_to_smem %s22, 16, [#allocation5], [#allocation2]
  %25 = sst [smem:[#allocation6]] %s3
  %27 = dma.done [#allocation2], 48
  %28 = sfence
  $region1: #{tpu_custom_call.1} parent=0
    #allocation7 [shape = 'u8[8192]{0}', space=vmem, size = 0x2000, scoped, tag = 'input window, operand 4, single buffered']
    #allocation8 [shape = 's32[1]{0}', space=sflag, size = 0x4, scoped, tag = 'scoped memory for tpu_custom_call.1']
    #allocation9 [shape = 's32[1]{0}', space=sflag, size = 0x4, scoped, tag = 'scoped memory for tpu_custom_call.1']
    #allocation10 [shape = 'u8[8192]{0}', space=vmem, size = 0x2000, scoped, tag = 'output window, operand 0, single buffered']
    %29 = vsyncpa [#allocation8], 0
    %30 = vsyncpa [#allocation9], 0
    // Predicated region
    $region2: #{tpu_custom_call.1} parent=1 // pred_check
      _
    $region3: #{tpu_custom_call.1} parent=1 // pred_check_branch
      %32 = sbr.rel (0) target = $region5
    $region4: #{tpu_custom_call.1} parent=1 // pred_region
      %34 = vsyncadd [#allocation8], 0
      %s35 = sshll.u32 %s4, 4
      %s36 = int_to_ptr.hbm [resolvable:$true] %s35
      %s37 = sshll.u32 [#allocation7], 4
      %s38 = int_to_ptr.vmem [resolvable:$true] %s37
      %43 = dma.hbm_to_vmem [thread:$0]  %s36, 256, %s38, [#allocation8], 128, 128, 8
    $region5: #{tpu_custom_call.1} parent=1 // pred_fallthru
      _
    // Predicated region
    $region6: #{tpu_custom_call.1} parent=1 // pred_check
      _
    $region7: #{tpu_custom_call.1} parent=1 // pred_check_branch
      %45 = sbr.rel (0) target = $region9
    $region8: #{tpu_custom_call.1} parent=1 // pred_region
      %47 = dma.done [#allocation8], 256
    $region9: #{tpu_custom_call.1} parent=1 // pred_fallthru
      _
    %s48 = sld [smem:[#allocation3]]
    %s49 = sld [smem:[#allocation3 + $0x1]]
    %s50 = sld [smem:[#allocation3 + $0x2]]
    %s51 = sld [smem:[#allocation3 + $0x3]]
    %s52 = sld [smem:[#allocation3 + $0x4]]
    %s53 = sld [smem:[#allocation3 + $0x5]]
    %s54 = sld [smem:[#allocation3 + $0x6]]
    %s55 = sld [smem:[#allocation3 + $0x7]]
    %s56 = sld [smem:[#allocation3 + $0x8]]
    %s57 = sld [smem:[#allocation3 + $0x9]]
    %s58 = sld [smem:[#allocation3 + $0xa]]
    %s59 = sld [smem:[#allocation3 + $0xb]]
    %s60 = sld [smem:[#allocation3 + $0xc]]
    %s61 = sld [smem:[#allocation3 + $0xd]]
    %s62 = sld [smem:[#allocation3 + $0xe]]
    %s63 = sld [smem:[#allocation3 + $0xf]]
    %s64 = sld [smem:[#allocation3 + $0x10]]
    %s65 = sld [smem:[#allocation3 + $0x11]]
    %s66 = sld [smem:[#allocation3 + $0x12]]
    %s67 = sld [smem:[#allocation3 + $0x13]]
    %s68 = sld [smem:[#allocation3 + $0x14]]
    %s69 = sld [smem:[#allocation3 + $0x15]]
    %s70 = sld [smem:[#allocation3 + $0x16]]
    %s71 = sld [smem:[#allocation3 + $0x17]]
    %s72 = sld [smem:[#allocation3 + $0x18]]
    %s73 = sld [smem:[#allocation3 + $0x19]]
    %s74 = sld [smem:[#allocation3 + $0x1a]]
    %s75 = sld [smem:[#allocation3 + $0x1b]]
    %s76 = sld [smem:[#allocation3 + $0x1c]]
    %s77 = sld [smem:[#allocation3 + $0x1d]]
    %s78 = sld [smem:[#allocation3 + $0x1e]]
    %s79 = sld [smem:[#allocation3 + $0x1f]]
    %s80 = sld [smem:[#allocation4]]
    %s81 = sld [smem:[#allocation4 + $0x1]]
    %s82 = sld [smem:[#allocation4 + $0x2]]
    %s83 = sld [smem:[#allocation4 + $0x3]]
    %s84 = sld [smem:[#allocation4 + $0x4]]
    %s85 = sld [smem:[#allocation4 + $0x5]]
    %s86 = sld [smem:[#allocation4 + $0x6]]
    %s87 = sld [smem:[#allocation4 + $0x7]]
    %s88 = sld [smem:[#allocation4 + $0x8]]
    %s89 = sld [smem:[#allocation4 + $0x9]]
    %s90 = sld [smem:[#allocation4 + $0xa]]
    %s91 = sld [smem:[#allocation4 + $0xb]]
    %s92 = sld [smem:[#allocation4 + $0xc]]
    %s93 = sld [smem:[#allocation4 + $0xd]]
    %s94 = sld [smem:[#allocation4 + $0xe]]
    %s95 = sld [smem:[#allocation4 + $0xf]]
    %s96 = sld [smem:[#allocation4 + $0x10]]
    %s97 = sld [smem:[#allocation4 + $0x11]]
    %s98 = sld [smem:[#allocation4 + $0x12]]
    %s99 = sld [smem:[#allocation4 + $0x13]]
    %s100 = sld [smem:[#allocation4 + $0x14]]
    %s101 = sld [smem:[#allocation4 + $0x15]]
    %s102 = sld [smem:[#allocation4 + $0x16]]
    %s103 = sld [smem:[#allocation4 + $0x17]]
    %s104 = sld [smem:[#allocation4 + $0x18]]
    %s105 = sld [smem:[#allocation4 + $0x19]]
    %s106 = sld [smem:[#allocation4 + $0x1a]]
    %s107 = sld [smem:[#allocation4 + $0x1b]]
    %s108 = sld [smem:[#allocation4 + $0x1c]]
    %s109 = sld [smem:[#allocation4 + $0x1d]]
    %s110 = sld [smem:[#allocation4 + $0x1e]]
    %s111 = sld [smem:[#allocation4 + $0x1f]]
    %s112 = sld [smem:[#allocation6]]
    %v113 = vstv %s112
    %v114 = vld [vmem:[#allocation7] sm:$0xff]
    %v115 = vld [vmem:[#allocation7 + $0x8] sm:$0xff]
    %v116 = vstv %s48
    %v117 = vmul.f32 %v114, %v116
    %v118 = vmul.f32 %v115, %v116
    %v119 = vstv %s80
    %v120 = vadd.f32 %v117, %v119
    %v121 = vadd.f32 %v118, %v119
    %v122 = vmax.f32 %v120, 0.0
    %v123 = vmax.f32 %v121, 0.0
    %v124 = vadd.f32 %v113, %v122
    %v125 = vadd.f32 %v113, %v123
    %v126 = vstv %s49
    %v127 = vmul.f32 %v114, %v126
    %v128 = vmul.f32 %v115, %v126
    %v129 = vstv %s81
    %v130 = vadd.f32 %v127, %v129
    %v131 = vadd.f32 %v128, %v129
    %v132 = vmax.f32 %v130, 0.0
    %v133 = vmax.f32 %v131, 0.0
    %v134 = vadd.f32 %v124, %v132
    %v135 = vadd.f32 %v125, %v133
    %v136 = vstv %s50
    %v137 = vmul.f32 %v114, %v136
    %v138 = vmul.f32 %v115, %v136
    %v139 = vstv %s82
    %v140 = vadd.f32 %v137, %v139
    %v141 = vadd.f32 %v138, %v139
    %v142 = vmax.f32 %v140, 0.0
    %v143 = vmax.f32 %v141, 0.0
    %v144 = vadd.f32 %v134, %v142
    %v145 = vadd.f32 %v135, %v143
    %v146 = vstv %s51
    %v147 = vmul.f32 %v114, %v146
    %v148 = vmul.f32 %v115, %v146
    %v149 = vstv %s83
    %v150 = vadd.f32 %v147, %v149
    %v151 = vadd.f32 %v148, %v149
    %v152 = vmax.f32 %v150, 0.0
    %v153 = vmax.f32 %v151, 0.0
    %v154 = vadd.f32 %v144, %v152
    %v155 = vadd.f32 %v145, %v153
    %v156 = vstv %s52
    %v157 = vmul.f32 %v114, %v156
    %v158 = vmul.f32 %v115, %v156
    %v159 = vstv %s84
    %v160 = vadd.f32 %v157, %v159
    %v161 = vadd.f32 %v158, %v159
    %v162 = vmax.f32 %v160, 0.0
    %v163 = vmax.f32 %v161, 0.0
    %v164 = vadd.f32 %v154, %v162
    %v165 = vadd.f32 %v155, %v163
    %v166 = vstv %s53
    %v167 = vmul.f32 %v114, %v166
    %v168 = vmul.f32 %v115, %v166
    %v169 = vstv %s85
    %v170 = vadd.f32 %v167, %v169
    %v171 = vadd.f32 %v168, %v169
    %v172 = vmax.f32 %v170, 0.0
    %v173 = vmax.f32 %v171, 0.0
    %v174 = vadd.f32 %v164, %v172
    %v175 = vadd.f32 %v165, %v173
    %v176 = vstv %s54
    %v177 = vmul.f32 %v114, %v176
    %v178 = vmul.f32 %v115, %v176
    %v179 = vstv %s86
    %v180 = vadd.f32 %v177, %v179
    %v181 = vadd.f32 %v178, %v179
    %v182 = vmax.f32 %v180, 0.0
    %v183 = vmax.f32 %v181, 0.0
    %v184 = vadd.f32 %v174, %v182
    %v185 = vadd.f32 %v175, %v183
    %v186 = vstv %s55
    %v187 = vmul.f32 %v114, %v186
    %v188 = vmul.f32 %v115, %v186
    %v189 = vstv %s87
    %v190 = vadd.f32 %v187, %v189
    %v191 = vadd.f32 %v188, %v189
    %v192 = vmax.f32 %v190, 0.0
    %v193 = vmax.f32 %v191, 0.0
    %v194 = vadd.f32 %v184, %v192
    %v195 = vadd.f32 %v185, %v193
    %v196 = vstv %s56
    %v197 = vmul.f32 %v114, %v196
    %v198 = vmul.f32 %v115, %v196
    %v199 = vstv %s88
    %v200 = vadd.f32 %v197, %v199
    %v201 = vadd.f32 %v198, %v199
    %v202 = vmax.f32 %v200, 0.0
    %v203 = vmax.f32 %v201, 0.0
    %v204 = vadd.f32 %v194, %v202
    %v205 = vadd.f32 %v195, %v203
    %v206 = vstv %s57
    %v207 = vmul.f32 %v114, %v206
    %v208 = vmul.f32 %v115, %v206
    %v209 = vstv %s89
    %v210 = vadd.f32 %v207, %v209
    %v211 = vadd.f32 %v208, %v209
    %v212 = vmax.f32 %v210, 0.0
    %v213 = vmax.f32 %v211, 0.0
    %v214 = vadd.f32 %v204, %v212
    %v215 = vadd.f32 %v205, %v213
    %v216 = vstv %s58
    %v217 = vmul.f32 %v114, %v216
    %v218 = vmul.f32 %v115, %v216
    %v219 = vstv %s90
    %v220 = vadd.f32 %v217, %v219
    %v221 = vadd.f32 %v218, %v219
    %v222 = vmax.f32 %v220, 0.0
    %v223 = vmax.f32 %v221, 0.0
    %v224 = vadd.f32 %v214, %v222
    %v225 = vadd.f32 %v215, %v223
    %v226 = vstv %s59
    %v227 = vmul.f32 %v114, %v226
    %v228 = vmul.f32 %v115, %v226
    %v229 = vstv %s91
    %v230 = vadd.f32 %v227, %v229
    %v231 = vadd.f32 %v228, %v229
    %v232 = vmax.f32 %v230, 0.0
    %v233 = vmax.f32 %v231, 0.0
    %v234 = vadd.f32 %v224, %v232
    %v235 = vadd.f32 %v225, %v233
    %v236 = vstv %s60
    %v237 = vmul.f32 %v114, %v236
    %v238 = vmul.f32 %v115, %v236
    %v239 = vstv %s92
    %v240 = vadd.f32 %v237, %v239
    %v241 = vadd.f32 %v238, %v239
    %v242 = vmax.f32 %v240, 0.0
    %v243 = vmax.f32 %v241, 0.0
    %v244 = vadd.f32 %v234, %v242
    %v245 = vadd.f32 %v235, %v243
    %v246 = vstv %s61
    %v247 = vmul.f32 %v114, %v246
    %v248 = vmul.f32 %v115, %v246
    %v249 = vstv %s93
    %v250 = vadd.f32 %v247, %v249
    %v251 = vadd.f32 %v248, %v249
    %v252 = vmax.f32 %v250, 0.0
    %v253 = vmax.f32 %v251, 0.0
    %v254 = vadd.f32 %v244, %v252
    %v255 = vadd.f32 %v245, %v253
    %v256 = vstv %s62
    %v257 = vmul.f32 %v114, %v256
    %v258 = vmul.f32 %v115, %v256
    %v259 = vstv %s94
    %v260 = vadd.f32 %v257, %v259
    %v261 = vadd.f32 %v258, %v259
    %v262 = vmax.f32 %v260, 0.0
    %v263 = vmax.f32 %v261, 0.0
    %v264 = vadd.f32 %v254, %v262
    %v265 = vadd.f32 %v255, %v263
    %v266 = vstv %s63
    %v267 = vmul.f32 %v114, %v266
    %v268 = vmul.f32 %v115, %v266
    %v269 = vstv %s95
    %v270 = vadd.f32 %v267, %v269
    %v271 = vadd.f32 %v268, %v269
    %v272 = vmax.f32 %v270, 0.0
    %v273 = vmax.f32 %v271, 0.0
    %v274 = vadd.f32 %v264, %v272
    %v275 = vadd.f32 %v265, %v273
    %v276 = vstv %s64
    %v277 = vmul.f32 %v114, %v276
    %v278 = vmul.f32 %v115, %v276
    %v279 = vstv %s96
    %v280 = vadd.f32 %v277, %v279
    %v281 = vadd.f32 %v278, %v279
    %v282 = vmax.f32 %v280, 0.0
    %v283 = vmax.f32 %v281, 0.0
    %v284 = vadd.f32 %v274, %v282
    %v285 = vadd.f32 %v275, %v283
    %v286 = vstv %s65
    %v287 = vmul.f32 %v114, %v286
    %v288 = vmul.f32 %v115, %v286
    %v289 = vstv %s97
    %v290 = vadd.f32 %v287, %v289
    %v291 = vadd.f32 %v288, %v289
    %v292 = vmax.f32 %v290, 0.0
    %v293 = vmax.f32 %v291, 0.0
    %v294 = vadd.f32 %v284, %v292
    %v295 = vadd.f32 %v285, %v293
    %v296 = vstv %s66
    %v297 = vmul.f32 %v114, %v296
    %v298 = vmul.f32 %v115, %v296
    %v299 = vstv %s98
    %v300 = vadd.f32 %v297, %v299
    %v301 = vadd.f32 %v298, %v299
    %v302 = vmin.f32 %v300, 0.0
    %v303 = vmin.f32 %v301, 0.0
    %v304 = vadd.f32 %v294, %v302
    %v305 = vadd.f32 %v295, %v303
    %v306 = vstv %s67
    %v307 = vmul.f32 %v114, %v306
    %v308 = vmul.f32 %v115, %v306
    %v309 = vstv %s99
    %v310 = vadd.f32 %v307, %v309
    %v311 = vadd.f32 %v308, %v309
    %v312 = vmin.f32 %v310, 0.0
    %v313 = vmin.f32 %v311, 0.0
    %v314 = vadd.f32 %v304, %v312
    %v315 = vadd.f32 %v305, %v313
    %v316 = vstv %s68
    %v317 = vmul.f32 %v114, %v316
    %v318 = vmul.f32 %v115, %v316
    %v319 = vstv %s100
    %v320 = vadd.f32 %v317, %v319
    %v321 = vadd.f32 %v318, %v319
    %v322 = vmin.f32 %v320, 0.0
    %v323 = vmin.f32 %v321, 0.0
    %v324 = vadd.f32 %v314, %v322
    %v325 = vadd.f32 %v315, %v323
    %v326 = vstv %s69
    %v327 = vmul.f32 %v114, %v326
    %v328 = vmul.f32 %v115, %v326
    %v329 = vstv %s101
    %v330 = vadd.f32 %v327, %v329
    %v331 = vadd.f32 %v328, %v329
    %v332 = vmin.f32 %v330, 0.0
    %v333 = vmin.f32 %v331, 0.0
    %v334 = vadd.f32 %v324, %v332
    %v335 = vadd.f32 %v325, %v333
    %v336 = vstv %s70
    %v337 = vmul.f32 %v114, %v336
    %v338 = vmul.f32 %v115, %v336
    %v339 = vstv %s102
    %v340 = vadd.f32 %v337, %v339
    %v341 = vadd.f32 %v338, %v339
    %v342 = vmin.f32 %v340, 0.0
    %v343 = vmin.f32 %v341, 0.0
    %v344 = vadd.f32 %v334, %v342
    %v345 = vadd.f32 %v335, %v343
    %v346 = vstv %s71
    %v347 = vmul.f32 %v114, %v346
    %v348 = vmul.f32 %v115, %v346
    %v349 = vstv %s103
    %v350 = vadd.f32 %v347, %v349
    %v351 = vadd.f32 %v348, %v349
    %v352 = vmin.f32 %v350, 0.0
    %v353 = vmin.f32 %v351, 0.0
    %v354 = vadd.f32 %v344, %v352
    %v355 = vadd.f32 %v345, %v353
    %v356 = vstv %s72
    %v357 = vmul.f32 %v114, %v356
    %v358 = vmul.f32 %v115, %v356
    %v359 = vstv %s104
    %v360 = vadd.f32 %v357, %v359
    %v361 = vadd.f32 %v358, %v359
    %v362 = vmin.f32 %v360, 0.0
    %v363 = vmin.f32 %v361, 0.0
    %v364 = vadd.f32 %v354, %v362
    %v365 = vadd.f32 %v355, %v363
    %v366 = vstv %s73
    %v367 = vmul.f32 %v114, %v366
    %v368 = vmul.f32 %v115, %v366
    %v369 = vstv %s105
    %v370 = vadd.f32 %v367, %v369
    %v371 = vadd.f32 %v368, %v369
    %v372 = vmin.f32 %v370, 0.0
    %v373 = vmin.f32 %v371, 0.0
    %v374 = vadd.f32 %v364, %v372
    %v375 = vadd.f32 %v365, %v373
    %v376 = vstv %s74
    %v377 = vmul.f32 %v114, %v376
    %v378 = vmul.f32 %v115, %v376
    %v379 = vstv %s106
    %v380 = vadd.f32 %v377, %v379
    %v381 = vadd.f32 %v378, %v379
    %v382 = vmin.f32 %v380, 0.0
    %v383 = vmin.f32 %v381, 0.0
    %v384 = vadd.f32 %v374, %v382
    %v385 = vadd.f32 %v375, %v383
    %v386 = vstv %s75
    %v387 = vmul.f32 %v114, %v386
    %v388 = vmul.f32 %v115, %v386
    %v389 = vstv %s107
    %v390 = vadd.f32 %v387, %v389
    %v391 = vadd.f32 %v388, %v389
    %v392 = vmin.f32 %v390, 0.0
    %v393 = vmin.f32 %v391, 0.0
    %v394 = vadd.f32 %v384, %v392
    %v395 = vadd.f32 %v385, %v393
    %v396 = vstv %s76
    %v397 = vmul.f32 %v114, %v396
    %v398 = vmul.f32 %v115, %v396
    %v399 = vstv %s108
    %v400 = vadd.f32 %v397, %v399
    %v401 = vadd.f32 %v398, %v399
    %v402 = vmin.f32 %v400, 0.0
    %v403 = vmin.f32 %v401, 0.0
    %v404 = vadd.f32 %v394, %v402
    %v405 = vadd.f32 %v395, %v403
    %v406 = vstv %s77
    %v407 = vmul.f32 %v114, %v406
    %v408 = vmul.f32 %v115, %v406
    %v409 = vstv %s109
    %v410 = vadd.f32 %v407, %v409
    %v411 = vadd.f32 %v408, %v409
    %v412 = vmin.f32 %v410, 0.0
    %v413 = vmin.f32 %v411, 0.0
    %v414 = vadd.f32 %v404, %v412
    %v415 = vadd.f32 %v405, %v413
    %v416 = vstv %s78
    %v417 = vmul.f32 %v114, %v416
    %v418 = vmul.f32 %v115, %v416
    %v419 = vstv %s110
    %v420 = vadd.f32 %v417, %v419
    %v421 = vadd.f32 %v418, %v419
    %v422 = vmin.f32 %v420, 0.0
    %v423 = vmin.f32 %v421, 0.0
    %v424 = vadd.f32 %v414, %v422
    %v425 = vadd.f32 %v415, %v423
    %v426 = vstv %s79
    %v427 = vmul.f32 %v114, %v426
    %v428 = vmul.f32 %v115, %v426
    %v429 = vstv %s111
    %v430 = vadd.f32 %v427, %v429
    %v431 = vadd.f32 %v428, %v429
    %v432 = vmin.f32 %v430, 0.0
    %v433 = vmin.f32 %v431, 0.0
    %v434 = vadd.f32 %v424, %v432
    %v435 = vadd.f32 %v425, %v433
    %436 = vst [vmem:[#allocation10] sm:$0xff] %v434
    %437 = vst [vmem:[#allocation10 + $0x8] sm:$0xff] %v435
    // Predicated region
    $region10: #{tpu_custom_call.1} parent=1 // pred_check
      _
    $region11: #{tpu_custom_call.1} parent=1 // pred_check_branch
      %439 = sbr.rel (0) target = $region13
    $region12: #{tpu_custom_call.1} parent=1 // pred_region
      %441 = vsyncadd [#allocation9], 0
      %s442 = sshll.u32 [#allocation10], 4
      %s443 = int_to_ptr.vmem [resolvable:$true] %s442
      %s444 = sshll.u32 %s5, 4
      %s445 = int_to_ptr.hbm [resolvable:$true] %s444
      %450 = dma.vmem_to_hbm [thread:$0]  %s443, 256, %s445, [#allocation9], 128, 128, 8
    $region13: #{tpu_custom_call.1} parent=1 // pred_fallthru
      _
    // Predicated region
    $region14: #{tpu_custom_call.1} parent=1 // pred_check
      _
    $region15: #{tpu_custom_call.1} parent=1 // pred_check_branch
      %452 = sbr.rel (0) target = $region17
    $region16: #{tpu_custom_call.1} parent=1 // pred_region
      %454 = dma.done [#allocation9], 256
    $region17: #{tpu_custom_call.1} parent=1 // pred_fallthru
      _
    %455 = vsyncpa [#allocation8], 1
    %456 = vsyncpa [#allocation9], 1

</llo_original>
